<compile_context>
chip_gen: v6e
topology: v6e:2x2x1
jax: 0.10.0
libtpu: 0.0.40
codegen_flags: <defaults>
</compile_context>

<pallas_src>
import functools

import jax
import jax.numpy as jnp
from jax.experimental import pallas as pl
from jax.experimental.pallas import tpu as pltpu


def _round_up(x, m):
    return (x + m - 1) // m * m


def _choose_token_tile(c):
    # Prefer a full MXU M-tile (256 on v6e/v7x, 128 on v5e); shrink for tiny problems.
    for tm in (256, 128, 64, 32, 16, 8):
        if c >= tm:
            return tm
    return 8


# ----------------------------- Pallas kernel ---------------------------------
def _grouped_expert_kernel(counts_ref, x_ref, wg_ref, wu_ref, wd_ref, o_ref, *, tm):
    """Grouped per-expert MLP over pre-gathered token tiles.

    grid = (E, tiles_per_expert); both axes independent -> 'parallel'.

    counts_ref : SMEM (E,)   int32  tokens dispatched to each expert (scalar prefetch)
    x_ref      : (TM, H)     bf16   gathered tokens of expert e, tile t (zero-padded)
    wg/wu_ref  : (1, H, I)   bf16   gate / up weights of expert e (pre-transposed)
    wd_ref     : (1, I, H)   bf16   down weights of expert e (pre-transposed)
    o_ref      : (TM, H)     f32    per-slot expert output
    """
    e = pl.program_id(0)
    t = pl.program_id(1)
    count = counts_ref[e]
    tile_start = t * tm

    @pl.when(tile_start < count)  # skip empty experts / fully-padded tiles
    def _():
        x = x_ref[...]
        gate = jnp.dot(x, wg_ref[0], preferred_element_type=jnp.float32)
        up = jnp.dot(x, wu_ref[0], preferred_element_type=jnp.float32)
        h = (gate * jax.nn.sigmoid(gate)) * up                      # SiLU(gate)*up in f32
        o_ref[...] = jnp.dot(h.astype(jnp.bfloat16), wd_ref[0],
                             preferred_element_type=jnp.float32)

    @pl.when(tile_start >= count)
    def _():
        o_ref[...] = jnp.zeros_like(o_ref)


def grouped_expert_pallas(x_sorted, counts, wg, wu, wd, *, tm):
    """x_sorted: (E*C_pad, H) bf16; counts: (E,) i32; wg/wu: (E,H,I) bf16; wd: (E,I,H) bf16."""
    T, H = x_sorted.shape
    E, _, I = wg.shape
    tiles_per_expert = T // (E * tm)
    assert T == E * tiles_per_expert * tm

    kernel = functools.partial(_grouped_expert_kernel, tm=tm)
    return pl.pallas_call(
        kernel,
        out_shape=jax.ShapeDtypeStruct((T, H), jnp.float32),
        grid_spec=pltpu.PrefetchScalarGridSpec(
            num_scalar_prefetch=1,                       # counts -> SMEM
            grid=(E, tiles_per_expert),
            in_specs=[
                pl.BlockSpec((tm, H), lambda e, t, counts: (e * tiles_per_expert + t, 0)),
                pl.BlockSpec((1, H, I), lambda e, t, counts: (e, 0, 0)),
                pl.BlockSpec((1, H, I), lambda e, t, counts: (e, 0, 0)),
                pl.BlockSpec((1, I, H), lambda e, t, counts: (e, 0, 0)),
            ],
            out_specs=pl.BlockSpec((tm, H), lambda e, t, counts: (e * tiles_per_expert + t, 0)),
        ),
        compiler_params=pltpu.CompilerParams(
            # Every grid step writes a distinct output tile -> both axes parallel
            # (lets v7x shard the grid across its 2 TensorCores).
            dimension_semantics=("parallel", "parallel"),
            # NOTE: for production H/I, re-derive the VMEM budget (v7x: 64 MiB
            # physical / 32 MiB scoped default) and raise vmem_limit_bytes if needed.
        ),
    )(counts, x_sorted, wg, wu, wd)


# ------------------------------ JAX routing glue --------------------------------
def compute_dispatch_mask(x_flat, w_router, num_experts_per_token, capacity):
    """Router softmax + top-k + capacity dropping.  Returns (N, E) bool dispatch mask."""
    # TODO(synk): torch.topk tie-breaking order is not bit-reproduced; irrelevant for
    # continuous random inputs.
    logits = x_flat @ w_router.T                                # (N, E)
    probs = jax.nn.softmax(logits, axis=-1)                     # (N, E)
    _, topk_idx = jax.lax.top_k(probs, num_experts_per_token)   # (N, k)
    E = w_router.shape[0]
    mask = jnp.any(topk_idx[:, :, None] == jnp.arange(E)[None, None, :], axis=1)  # (N, E)

    # Capacity dropping: per expert, keep only the `capacity` highest-probability tokens.
    importance = jnp.where(mask, probs, -jnp.inf)
    rank = jnp.argsort(jnp.argsort(-importance, axis=0), axis=0)   # 0 = most important
    mask = mask & (rank < capacity)
    return mask


def build_dispatch_layout(mask, capacity, tm):
    """Compact dispatched tokens into fixed per-expert slots.

    mask: (N, E) bool.  Returns:
      token_for_slot : (E*C_pad,) int32  token id per slot (N = sentinel/padding)
      counts         : (E,)       int32  dispatched tokens per expert
      c_pad          : int               padded per-expert segment length (multiple of tm)
    """
    N, E = mask.shape
    c_pad = _round_up(min(capacity, N), tm)
    m_i32 = mask.astype(jnp.int32)
    pos_in_expert = jnp.cumsum(m_i32, axis=0) - m_i32                      # exclusive cumsum
    slot = jnp.where(mask, jnp.arange(E)[None, :] * c_pad + pos_in_expert, E * c_pad)
    token_ids = jnp.broadcast_to(jnp.arange(N, dtype=jnp.int32)[:, None], (N, E))
    token_for_slot = jnp.full((E * c_pad + 1,), N, dtype=jnp.int32)
    token_for_slot = token_for_slot.at[slot.reshape(-1)].set(token_ids.reshape(-1))
    token_for_slot = token_for_slot[: E * c_pad]
    counts = jnp.sum(m_i32, axis=0).astype(jnp.int32)
    return token_for_slot, counts, c_pad


def mixture_of_experts_forward(hidden_states, params, num_experts_per_token, capacity,
                               token_tile=None):
    B, S, H = hidden_states.shape
    N = B * S
    x_flat = hidden_states.reshape(N, H).astype(jnp.float32)

    mask = compute_dispatch_mask(x_flat, params["w_router"],
                                 num_experts_per_token, capacity)          # (N, E) bool

    tm = _choose_token_tile(min(capacity, N)) if token_tile is None else token_tile
    token_for_slot, counts, _ = build_dispatch_layout(mask, capacity, tm)

    # Gather token rows into per-expert slots; sentinel slot -> zero row.  bf16 for MXU.
    x_padded = jnp.concatenate([x_flat, jnp.zeros((1, H), jnp.float32)], axis=0)
    x_sorted = x_padded[token_for_slot].astype(jnp.bfloat16)               # (E*C_pad, H)

    out_slots = grouped_expert_pallas(
        x_sorted, counts,
        params["wg"].astype(jnp.bfloat16),
        params["wu"].astype(jnp.bfloat16),
        params["wd"].astype(jnp.bfloat16),
        tm=tm,
    )                                                                      # (E*C_pad, H) f32

    # Scatter-add back to tokens (unweighted sum over a token's experts, like PyTorch);
    # padded slots land on row N which is dropped.
    out_flat = jnp.zeros((N + 1, H), jnp.float32).at[token_for_slot].add(out_slots)[:N]
    return out_flat.reshape(B, S, H)


def mixture_of_experts_reference(hidden_states, params, num_experts_per_token, capacity):
    """Pure-JAX f32 reference mirroring the PyTorch forward (dense + mask)."""
    B, S, H = hidden_states.shape
    x_flat = hidden_states.reshape(B * S, H).astype(jnp.float32)
    mask = compute_dispatch_mask(x_flat, params["w_router"],
                                 num_experts_per_token, capacity)
    E = params["wg"].shape[0]
    out = jnp.zeros_like(x_flat)
    for e in range(E):
        gate = x_flat @ params["wg"][e]
        up = x_flat @ params["wu"][e]
        h = (gate * jax.nn.sigmoid(gate)) * up
        expert_out = h @ params["wd"][e]
        out = out + mask[:, e:e + 1].astype(jnp.float32) * expert_out
    return out.reshape(B, S, H)


# ------------------------------ main -------------------------------------------
if __name__ == "__main__":
    # Small, TPU-tile-friendly config (hidden / intermediate multiples of 128).
    hidden_size = 128
    intermediate_size = 256
    num_experts = 8
    num_experts_per_token = 2
    max_position_embeddings = 2048
    expert_capacity_factor = 1.25
    capacity = int(expert_capacity_factor * (max_position_embeddings / num_experts))  # 320

    batch, seq = 2, 8  # N = 16 tokens

    key = jax.random.PRNGKey(0)
    k_x, k_r, k_g, k_u, k_d = jax.random.split(key, 5)
    init = 0.02

    params = {
        "w_router": init * jax.random.normal(k_r, (num_experts, hidden_size), jnp.float32),
        # stacked, pre-transposed expert weights (right-multiplication layout)
        "wg": init * jax.random.normal(k_g, (num_experts, hidden_size, intermediate_size), jnp.float32),
        "wu": init * jax.random.normal(k_u, (num_experts, hidden_size, intermediate_size), jnp.float32),
        "wd": init * jax.random.normal(k_d, (num_experts, intermediate_size, hidden_size), jnp.float32),
    }

    hidden_states = jax.random.normal(k_x, (batch, seq, hidden_size), jnp.float32)

    out = mixture_of_experts_forward(
        hidden_states, params, num_experts_per_token, capacity
    )
    out = jax.block_until_ready(out)

    ref = mixture_of_experts_reference(
        hidden_states, params, num_experts_per_token, capacity
    )
    assert out.shape == (batch, seq, hidden_size)
    max_err = float(jnp.max(jnp.abs(out - ref)))
    assert max_err < 5e-2, f"mismatch vs reference: {max_err}"

    print("KERNEL_OK")
</pallas_src>

<mosaic_0001>
module attributes {stable_mosaic.version = 11 : i64} {
  func.func @_grouped_expert_kernel(%arg0: i32, %arg1: i32, %arg2: memref<8xi32, #tpu.memory_space<smem>>, %arg3: memref<16x128xbf16, #tpu.memory_space<vmem>>, %arg4: memref<1x128x256xbf16, #tpu.memory_space<vmem>>, %arg5: memref<1x128x256xbf16, #tpu.memory_space<vmem>>, %arg6: memref<1x256x128xbf16, #tpu.memory_space<vmem>>, %arg7: memref<16x128xf32, #tpu.memory_space<vmem>>) attributes {dimension_semantics = [#tpu.dimension_semantics<parallel>, #tpu.dimension_semantics<parallel>], iteration_bounds = array<i64: 8, 1>, scalar_prefetch = 1 : i64, scratch_operands = 0 : i64, tpu.core_type = #tpu.core_type<tc>, window_params = [{transform_indices = @transform_0, window_bounds = array<i64: 16, 128>}, {transform_indices = @transform_1, window_bounds = array<i64: 1, 128, 256>}, {transform_indices = @transform_2, window_bounds = array<i64: 1, 128, 256>}, {transform_indices = @transform_3, window_bounds = array<i64: 1, 256, 128>}, {transform_indices = @transform_4, window_bounds = array<i64: 16, 128>}]} {
    %0 = arith.index_cast %arg0 : i32 to index
    %1 = memref.load %arg2[%0] : memref<8xi32, #tpu.memory_space<smem>>
    %c16_i32 = arith.constant 16 : i32
    %2 = arith.muli %arg1, %c16_i32 : i32
    %3 = arith.cmpi slt, %2, %1 : i32
    %4 = arith.extui %3 : i1 to i32
    %c0_i32 = arith.constant 0 : i32
    %5 = arith.cmpi ne, %4, %c0_i32 : i32
    scf.if %5 {
      %c0 = arith.constant 0 : index
      %c0_1 = arith.constant 0 : index
      %9 = vector.load %arg3[%c0, %c0_1] : memref<16x128xbf16, #tpu.memory_space<vmem>>, vector<16x128xbf16>
      %c0_2 = arith.constant 0 : index
      %c0_3 = arith.constant 0 : index
      %c0_4 = arith.constant 0 : index
      %10 = vector.load %arg4[%c0_2, %c0_3, %c0_4] : memref<1x128x256xbf16, #tpu.memory_space<vmem>>, vector<1x128x256xbf16>
      %11 = vector.shape_cast %10 : vector<1x128x256xbf16> to vector<128x256xbf16>
      %cst = arith.constant dense<0.000000e+00> : vector<16x256xf32>
      %12 = tpu.matmul %9, %11, %cst {dimension_numbers = #tpu.dot_dimension_numbers<[1], [0], [0], [1], [0, 0, 1, 1], [], []>} : vector<16x128xbf16>, vector<128x256xbf16>, vector<16x256xf32> -> vector<16x256xf32>
      %c0_5 = arith.constant 0 : index
      %c0_6 = arith.constant 0 : index
      %c0_7 = arith.constant 0 : index
      %13 = vector.load %arg5[%c0_5, %c0_6, %c0_7] : memref<1x128x256xbf16, #tpu.memory_space<vmem>>, vector<1x128x256xbf16>
      %14 = vector.shape_cast %13 : vector<1x128x256xbf16> to vector<128x256xbf16>
      %cst_8 = arith.constant dense<0.000000e+00> : vector<16x256xf32>
      %15 = tpu.matmul %9, %14, %cst_8 {dimension_numbers = #tpu.dot_dimension_numbers<[1], [0], [0], [1], [0, 0, 1, 1], [], []>} : vector<16x128xbf16>, vector<128x256xbf16>, vector<16x256xf32> -> vector<16x256xf32>
      %16 = arith.negf %12 : vector<16x256xf32>
      %17 = math.exp %16 : vector<16x256xf32>
      %cst_9 = arith.constant 1.000000e+00 : f32
      %18 = vector.broadcast %cst_9 : f32 to vector<16x256xf32>
      %19 = arith.addf %18, %17 : vector<16x256xf32>
      %20 = arith.divf %18, %19 : vector<16x256xf32>
      %21 = arith.mulf %12, %20 : vector<16x256xf32>
      %22 = arith.mulf %21, %15 : vector<16x256xf32>
      %23 = arith.truncf %22 : vector<16x256xf32> to vector<16x256xbf16>
      %c0_10 = arith.constant 0 : index
      %c0_11 = arith.constant 0 : index
      %c0_12 = arith.constant 0 : index
      %24 = vector.load %arg6[%c0_10, %c0_11, %c0_12] : memref<1x256x128xbf16, #tpu.memory_space<vmem>>, vector<1x256x128xbf16>
      %25 = vector.shape_cast %24 : vector<1x256x128xbf16> to vector<256x128xbf16>
      %cst_13 = arith.constant dense<0.000000e+00> : vector<16x128xf32>
      %26 = tpu.matmul %23, %25, %cst_13 {dimension_numbers = #tpu.dot_dimension_numbers<[1], [0], [0], [1], [0, 0, 1, 1], [], []>} : vector<16x256xbf16>, vector<256x128xbf16>, vector<16x128xf32> -> vector<16x128xf32>
      %c0_14 = arith.constant 0 : index
      %c0_15 = arith.constant 0 : index
      %27 = vector.load %arg7[%c0_14, %c0_15] : memref<16x128xf32, #tpu.memory_space<vmem>>, vector<16x128xf32>
      tpu.vector_store %arg7[%c0_14, %c0_15], %26 {strides = array<i32>} : memref<16x128xf32, #tpu.memory_space<vmem>>, vector<16x128xf32>,
    } else {
    }
    %6 = arith.cmpi sge, %2, %1 : i32
    %7 = arith.extui %6 : i1 to i32
    %c0_i32_0 = arith.constant 0 : i32
    %8 = arith.cmpi ne, %7, %c0_i32_0 : i32
    scf.if %8 {
      %cst = arith.constant 0.000000e+00 : f32
      %9 = vector.broadcast %cst : f32 to vector<16x128xf32>
      %c0 = arith.constant 0 : index
      %c0_1 = arith.constant 0 : index
      %10 = vector.load %arg7[%c0, %c0_1] : memref<16x128xf32, #tpu.memory_space<vmem>>, vector<16x128xf32>
      tpu.vector_store %arg7[%c0, %c0_1], %9 {strides = array<i32>} : memref<16x128xf32, #tpu.memory_space<vmem>>, vector<16x128xf32>,
    } else {
    }
    return
  }
  func.func @transform_0(%arg0: i32, %arg1: i32, %arg2: memref<8xi32, #tpu.memory_space<smem>>) -> (i32, i32) {
    %c1_i32 = arith.constant 1 : i32
    %0 = arith.muli %arg0, %c1_i32 : i32
    %1 = arith.addi %0, %arg1 : i32
    %c0_i32 = arith.constant 0 : i32
    %c0_i32_0 = arith.constant 0 : i32
    return %1, %c0_i32 : i32, i32
  }
  func.func @transform_1(%arg0: i32, %arg1: i32, %arg2: memref<8xi32, #tpu.memory_space<smem>>) -> (i32, i32, i32) {
    %c0_i32 = arith.constant 0 : i32
    %c0_i32_0 = arith.constant 0 : i32
    %c0_i32_1 = arith.constant 0 : i32
    return %arg0, %c0_i32, %c0_i32_0 : i32, i32, i32
  }
  func.func @transform_2(%arg0: i32, %arg1: i32, %arg2: memref<8xi32, #tpu.memory_space<smem>>) -> (i32, i32, i32) {
    %c0_i32 = arith.constant 0 : i32
    %c0_i32_0 = arith.constant 0 : i32
    %c0_i32_1 = arith.constant 0 : i32
    return %arg0, %c0_i32, %c0_i32_0 : i32, i32, i32
  }
  func.func @transform_3(%arg0: i32, %arg1: i32, %arg2: memref<8xi32, #tpu.memory_space<smem>>) -> (i32, i32, i32) {
    %c0_i32 = arith.constant 0 : i32
    %c0_i32_0 = arith.constant 0 : i32
    %c0_i32_1 = arith.constant 0 : i32
    return %arg0, %c0_i32, %c0_i32_0 : i32, i32, i32
  }
  func.func @transform_4(%arg0: i32, %arg1: i32, %arg2: memref<8xi32, #tpu.memory_space<smem>>) -> (i32, i32) {
    %c1_i32 = arith.constant 1 : i32
    %0 = arith.muli %arg0, %c1_i32 : i32
    %1 = arith.addi %0, %arg1 : i32
    %c0_i32 = arith.constant 0 : i32
    %c0_i32_0 = arith.constant 0 : i32
    return %1, %c0_i32 : i32, i32
  }
}

</mosaic_0001>

<llo_original>
// kernel: tpu_custom_call.1
$region0: #{tpu_custom_call.1}
  #allocation0 [shape = 'u32[]', space=smem, size = 0x4, offset = 0x4, fixed_abs, tag = 'smem constant byte address 0x4 - core index']
  #allocation1 [shape = 'u32[144,128]{1,0:T(1,128)}', space=vmem, size = 0x12000, scoped, tag = 'internal scratch']
  #allocation2 [shape = 's32[1]{0}', space=sflag, size = 0x4, scoped, tag = 'scoped memory for tpu_custom_call.1']
  #allocation3 [shape = 'u8[512]{0}', space=smem, size = 0x200, scoped, tag = 'prefetched SMEM operand 0']
  %s0 = inlined_call_operand.hbm [shape: s32[8], index: 0, kind: input, shape index: {}]
  %s1 = inlined_call_operand.hbm [shape: bf16[128,128], index: 1, kind: input, shape index: {}]
  %s2 = inlined_call_operand.hbm [shape: bf16[8,128,256], index: 2, kind: input, shape index: {}]
  %s3 = inlined_call_operand.hbm [shape: bf16[8,128,256], index: 3, kind: input, shape index: {}]
  %s4 = inlined_call_operand.hbm [shape: bf16[8,256,128], index: 4, kind: input, shape index: {}]
  %s5 = inlined_call_operand.hbm [shape: f32[128,128], index: 5, kind: output, shape index: {}]
  %s6 = sld [smem:[#allocation0]]
  $region73: #{tpu_custom_call.1} parent=0
    _
  %s8 = ssub.s32 1, %s6
  %s9 = scalar_select 0, %s8, %s6
  %11 = dma.hbm_to_smem %s0, 16, [#allocation3], [#allocation2]
  %12 = dma.done [#allocation2], 16
  %13 = sfence
  $region1: #{tpu_custom_call.1} parent=0
    #allocation4 [shape = 'u8[8192]{0}', space=vmem, size = 0x2000, scoped, tag = 'input window, operand 1']
    #allocation5 [shape = 's32[2]{0}', space=sflag, size = 0x8, scoped, tag = 'scoped memory for tpu_custom_call.1']
    #allocation6 [shape = 's32[2]{0}', space=sflag, size = 0x8, scoped, tag = 'scoped memory for tpu_custom_call.1']
    #allocation7 [shape = 'u8[131072]{0}', space=vmem, size = 0x20000, scoped, tag = 'input window, operand 2']
    #allocation8 [shape = 's32[2]{0}', space=sflag, size = 0x8, scoped, tag = 'scoped memory for tpu_custom_call.1']
    #allocation9 [shape = 'u8[131072]{0}', space=vmem, size = 0x20000, scoped, tag = 'input window, operand 3']
    #allocation10 [shape = 'u8[131072]{0}', space=vmem, size = 0x20000, scoped, tag = 'input window, operand 4']
    #allocation11 [shape = 's32[2]{0}', space=sflag, size = 0x8, scoped, tag = 'scoped memory for tpu_custom_call.1']
    #allocation12 [shape = 'u8[16384]{0}', space=vmem, size = 0x4000, scoped, tag = 'output window, operand 0']
    %14 = vsyncpa [#allocation5], 0
    %s15 = scalar_lea.sflag [#allocation5], 1
    %16 = vsyncpa %s15, 0
    %17 = vsyncpa [#allocation8], 0
    %s18 = scalar_lea.sflag [#allocation8], 1
    %19 = vsyncpa %s18, 0
    %20 = vsyncpa [#allocation11], 0
    %s21 = scalar_lea.sflag [#allocation11], 1
    %22 = vsyncpa %s21, 0
    %23 = vsyncpa [#allocation6], 0
    %s24 = scalar_lea.sflag [#allocation6], 1
    %25 = vsyncpa %s24, 0
    loop: start=0, step=1, limit=10
    $region2: #{tpu_custom_call.1} parent=1 // loop_pre_header
      _
    $region3: #{tpu_custom_call.1} parent=1 // loop_header
      %s27 = sphi 0, %s31
      %p28 = scmp.ge.s32.totalorder %s27, 10
      %s34 = sphi 0, %s46
      %s35 = sphi 0, %s42
      %s36 = sphi 0, %s34
      %s37 = sphi 0, %s35
      %s38 = sphi 0, %s36
      %s39 = sphi 0, %s37
      %s51 = sphi 0, %s53
      %s54 = sphi 0, %s51
      %s55 = sphi 0, %s54
      %s71 = sphi 0, %s55
      %s77 = sphi 0, %s79
      %s80 = sphi 0, %s77
      %s81 = sphi 0, %s80
      %s97 = sphi 0, %s81
      %s103 = sphi 0, %s105
      %s106 = sphi 0, %s103
      %s107 = sphi 0, %s106
      %s123 = sphi 0, %s107
      %s129 = sphi 0, %s131
      %s132 = sphi 0, %s129
      %s133 = sphi 0, %s132
      %s149 = sphi 0, %s133
      %s157 = sphi 0, %s159
      %s160 = sphi 0, %s157
      %s161 = sphi 0, %s160
      %s177 = sphi 0, %s161
    $region4: #{tpu_custom_call.1} parent=1 // loop_header_branch
      %30 = sbr.rel (%p28) target = $region8
    $region5: #{tpu_custom_call.1} parent=1 // loop_body
      %s32 = ssub.s32 %s27, 1
      %s33 = ssub.s32 %s27, 2
      %s40 = sadd.s32 1, %s35
      %p41 = scmp.ge.s32.totalorder %s40, 1
      %s42 = scalar_select %p41, 0, %s40
      %s43 = sadd.s32 1, %s34
      %s44 = scalar_select %p41, %s43, %s34
      %p45 = scmp.ge.s32.totalorder %s44, 8
      %s46 = scalar_select %p45, 0, %s44
      %s47 = sadd.s32 %s34, %s35
      %s48 = sadd.s32 %s46, %s42
      %s49 = ssub.s32 %s47, %s48
      %p50 = scmp.eq.s32.totalorder %s49, 0
      %s52 = sadd.s32 %s51, 1
      %s53 = scalar_select %p50, %s51, %s52
      %p56 = pneg %p50
      %p57 = scmp.eq.s32.totalorder %s27, 7
      %p58 = por %p56, %p57
      %p59 = scmp.ne.s32.totalorder %s51, %s54
      %p60 = scmp.eq.s32.totalorder %s27, 0
      %p61 = por %p59, %p60
      %p62 = scmp.ne.s32.totalorder %s51, %s54
      %p63 = scmp.eq.s32.totalorder %s32, 7
      %p64 = por %p62, %p63
      %p65 = scmp.ne.s32.totalorder %s54, %s55
      %p66 = scmp.eq.s32.totalorder %s32, 0
      %p67 = por %p65, %p66
      %p68 = scmp.ne.s32.totalorder %s54, %s55
      %p69 = scmp.eq.s32.totalorder %s33, 7
      %p70 = por %p68, %p69
      %p72 = scmp.ne.s32.totalorder %s55, %s71
      %p73 = scmp.eq.s32.totalorder %s33, 0
      %p74 = por %p72, %p73
      %s75 = ssub.s32 %s34, %s46
      %p76 = scmp.eq.s32.totalorder %s75, 0
      %s78 = sadd.s32 %s77, 1
      %s79 = scalar_select %p76, %s77, %s78
      %p82 = pneg %p76
      %p83 = scmp.eq.s32.totalorder %s27, 7
      %p84 = por %p82, %p83
      %p85 = scmp.ne.s32.totalorder %s77, %s80
      %p86 = scmp.eq.s32.totalorder %s27, 0
      %p87 = por %p85, %p86
      %p88 = scmp.ne.s32.totalorder %s77, %s80
      %p89 = scmp.eq.s32.totalorder %s32, 7
      %p90 = por %p88, %p89
      %p91 = scmp.ne.s32.totalorder %s80, %s81
      %p92 = scmp.eq.s32.totalorder %s32, 0
      %p93 = por %p91, %p92
      %p94 = scmp.ne.s32.totalorder %s80, %s81
      %p95 = scmp.eq.s32.totalorder %s33, 7
      %p96 = por %p94, %p95
      %p98 = scmp.ne.s32.totalorder %s81, %s97
      %p99 = scmp.eq.s32.totalorder %s33, 0
      %p100 = por %p98, %p99
      %s101 = ssub.s32 %s34, %s46
      %p102 = scmp.eq.s32.totalorder %s101, 0
      %s104 = sadd.s32 %s103, 1
      %s105 = scalar_select %p102, %s103, %s104
      %p108 = pneg %p102
      %p109 = scmp.eq.s32.totalorder %s27, 7
      %p110 = por %p108, %p109
      %p111 = scmp.ne.s32.totalorder %s103, %s106
      %p112 = scmp.eq.s32.totalorder %s27, 0
      %p113 = por %p111, %p112
      %p114 = scmp.ne.s32.totalorder %s103, %s106
      %p115 = scmp.eq.s32.totalorder %s32, 7
      %p116 = por %p114, %p115
      %p117 = scmp.ne.s32.totalorder %s106, %s107
      %p118 = scmp.eq.s32.totalorder %s32, 0
      %p119 = por %p117, %p118
      %p120 = scmp.ne.s32.totalorder %s106, %s107
      %p121 = scmp.eq.s32.totalorder %s33, 7
      %p122 = por %p120, %p121
      %p124 = scmp.ne.s32.totalorder %s107, %s123
      %p125 = scmp.eq.s32.totalorder %s33, 0
      %p126 = por %p124, %p125
      %s127 = ssub.s32 %s34, %s46
      %p128 = scmp.eq.s32.totalorder %s127, 0
      %s130 = sadd.s32 %s129, 1
      %s131 = scalar_select %p128, %s129, %s130
      %p134 = pneg %p128
      %p135 = scmp.eq.s32.totalorder %s27, 7
      %p136 = por %p134, %p135
      %p137 = scmp.ne.s32.totalorder %s129, %s132
      %p138 = scmp.eq.s32.totalorder %s27, 0
      %p139 = por %p137, %p138
      %p140 = scmp.ne.s32.totalorder %s129, %s132
      %p141 = scmp.eq.s32.totalorder %s32, 7
      %p142 = por %p140, %p141
      %p143 = scmp.ne.s32.totalorder %s132, %s133
      %p144 = scmp.eq.s32.totalorder %s32, 0
      %p145 = por %p143, %p144
      %p146 = scmp.ne.s32.totalorder %s132, %s133
      %p147 = scmp.eq.s32.totalorder %s33, 7
      %p148 = por %p146, %p147
      %p150 = scmp.ne.s32.totalorder %s133, %s149
      %p151 = scmp.eq.s32.totalorder %s33, 0
      %p152 = por %p150, %p151
      %s153 = sadd.s32 %s34, %s35
      %s154 = sadd.s32 %s46, %s42
      %s155 = ssub.s32 %s153, %s154
      %p156 = scmp.eq.s32.totalorder %s155, 0
      %s158 = sadd.s32 %s157, 1
      %s159 = scalar_select %p156, %s157, %s158
      %p162 = pneg %p156
      %p163 = scmp.eq.s32.totalorder %s27, 7
      %p164 = por %p162, %p163
      %p165 = scmp.ne.s32.totalorder %s157, %s160
      %p166 = scmp.eq.s32.totalorder %s27, 0
      %p167 = por %p165, %p166
      %p168 = scmp.ne.s32.totalorder %s157, %s160
      %p169 = scmp.eq.s32.totalorder %s32, 7
      %p170 = por %p168, %p169
      %p171 = scmp.ne.s32.totalorder %s160, %s161
      %p172 = scmp.eq.s32.totalorder %s32, 0
      %p173 = por %p171, %p172
      %p174 = scmp.ne.s32.totalorder %s160, %s161
      %p175 = scmp.eq.s32.totalorder %s33, 7
      %p176 = por %p174, %p175
      %p178 = scmp.ne.s32.totalorder %s161, %s177
      %p179 = scmp.eq.s32.totalorder %s33, 0
      %p180 = por %p178, %p179
      %p181 = scmp.le.s32.totalorder 1, %s27
      %p182 = scmp.lt.s32.totalorder %s27, 9
      %p183 = pnand %p181, %p182
      %p184 = pneg %p183
      // Predicated region
      $region9: #{tpu_custom_call.1} parent=5 // pred_check
        _
      $region10: #{tpu_custom_call.1} parent=5 // pred_check_branch
        %186 = sbr.rel (%p183) target = $region12
      $region11: #{tpu_custom_call.1} parent=5 // pred_region
        %s187 = ssub.s32 %s27, 1
      $region12: #{tpu_custom_call.1} parent=5 // pred_fallthru
        _
      %p188 = scmp.lt.s32.totalorder %s27, 8
      // Predicated region
      $region13: #{tpu_custom_call.1} parent=5 // pred_check
        %p189 = pneg %p188
      $region14: #{tpu_custom_call.1} parent=5 // pred_check_branch
        %191 = sbr.rel (%p189) target = $region16
      $region15: #{tpu_custom_call.1} parent=5 // pred_region
        // Predicated region
        $region17: #{tpu_custom_call.1} parent=15 // pred_check
          %p192 = pneg %p61
        $region18: #{tpu_custom_call.1} parent=15 // pred_check_branch
          %194 = sbr.rel (%p192) target = $region20
        $region19: #{tpu_custom_call.1} parent=15 // pred_region
          %s195 = sand.u32 %s51, 1
          %s196 = scalar_lea.sflag [#allocation5], %s195
          %s197 = sand.u32 %s51, 1
          %s198 = smul.addr %s197, 8
          %s199 = scalar_lea.vmem [#allocation4], %s198
          %s200 = sadd.s32 %s34, %s35
          %s201 = smul.u32 2, %s200
          %s203 = ssub.s32 128, 128
          %204 = vsyncadd %s196, %s203
          %s205 = smul.addr %s201, 64
          %s206 = scalar_lea.hbm %s1, %s205
          %s207 = sshll.u32 %s199, 4
          %s208 = int_to_ptr.vmem [resolvable:$true] %s207
          %213 = dma.hbm_to_vmem [thread:$0]  %s206, 128, %s208, %s196, 64, 64, 4
        $region20: #{tpu_custom_call.1} parent=15 // pred_fallthru
          _
        // Predicated region
        $region21: #{tpu_custom_call.1} parent=15 // pred_check
          %p214 = pneg %p87
        $region22: #{tpu_custom_call.1} parent=15 // pred_check_branch
          %216 = sbr.rel (%p214) target = $region24
        $region23: #{tpu_custom_call.1} parent=15 // pred_region
          %s217 = sand.u32 %s27, 1
          %s218 = scalar_lea.sflag [#allocation8], %s217
          %s219 = sand.u32 %s77, 1
          %s220 = smul.addr %s219, 128
          %s221 = scalar_lea.vmem [#allocation7], %s220
          %s223 = ssub.s32 2048, 2048
          %224 = vsyncadd %s218, %s223
          %s225 = smul.addr %s34, 32
          %s226 = smul.addr %s225, 64
          %s227 = scalar_lea.hbm %s2, %s226
          %s228 = sshll.u32 %s221, 4
          %s229 = int_to_ptr.vmem [resolvable:$true] %s228
          %234 = dma.hbm_to_vmem [thread:$0]  %s227, 2048, %s229, %s218, 128, 128, 8
        $region24: #{tpu_custom_call.1} parent=15 // pred_fallthru
          _
        // Predicated region
        $region25: #{tpu_custom_call.1} parent=15 // pred_check
          %p235 = pneg %p113
        $region26: #{tpu_custom_call.1} parent=15 // pred_check_branch
          %237 = sbr.rel (%p235) target = $region28
        $region27: #{tpu_custom_call.1} parent=15 // pred_region
          %s238 = sand.u32 %s27, 1
          %s239 = scalar_lea.sflag [#allocation8], %s238
          %s240 = sand.u32 %s103, 1
          %s241 = smul.addr %s240, 128
          %s242 = scalar_lea.vmem [#allocation9], %s241
          %s244 = ssub.s32 2048, 2048
          %245 = vsyncadd %s239, %s244
          %s246 = smul.addr %s34, 32
          %s247 = smul.addr %s246, 64
          %s248 = scalar_lea.hbm %s3, %s247
          %s249 = sshll.u32 %s242, 4
          %s250 = int_to_ptr.vmem [resolvable:$true] %s249
          %255 = dma.hbm_to_vmem [thread:$0]  %s248, 2048, %s250, %s239, 128, 128, 8
        $region28: #{tpu_custom_call.1} parent=15 // pred_fallthru
          _
        // Predicated region
        $region29: #{tpu_custom_call.1} parent=15 // pred_check
          %p256 = pneg %p139
        $region30: #{tpu_custom_call.1} parent=15 // pred_check_branch
          %258 = sbr.rel (%p256) target = $region32
        $region31: #{tpu_custom_call.1} parent=15 // pred_region
          %s259 = sand.u32 %s129, 1
          %s260 = scalar_lea.sflag [#allocation11], %s259
          %s261 = sand.u32 %s129, 1
          %s262 = smul.addr %s261, 128
          %s263 = scalar_lea.vmem [#allocation10], %s262
          %s265 = ssub.s32 2048, 2048
          %266 = vsyncadd %s260, %s265
          %s267 = smul.addr %s34, 32
          %s268 = smul.addr %s267, 64
          %s269 = scalar_lea.hbm %s4, %s268
          %s270 = sshll.u32 %s263, 4
          %s271 = int_to_ptr.vmem [resolvable:$true] %s270
          %276 = dma.hbm_to_vmem [thread:$0]  %s269, 2048, %s271, %s260, 64, 64, 4
        $region32: #{tpu_custom_call.1} parent=15 // pred_fallthru
          _
      $region16: #{tpu_custom_call.1} parent=5 // pred_fallthru
        _
      %p277 = scmp.le.s32.totalorder 1, %s27
      %p278 = scmp.lt.s32.totalorder %s27, 9
      %p279 = pnand %p277, %p278
      %p280 = pneg %p279
      // Predicated region
      $region33: #{tpu_custom_call.1} parent=5 // pred_check
        _
      $region34: #{tpu_custom_call.1} parent=5 // pred_check_branch
        %282 = sbr.rel (%p279) target = $region36
      $region35: #{tpu_custom_call.1} parent=5 // pred_region
        %s283 = ssub.s32 %s27, 1
        %s284 = sand.u32 %s54, 1
        %s285 = scalar_lea.sflag [#allocation5], %s284
        %s286 = sand.u32 %s54, 1
        %s287 = smul.addr %s286, 8
        %s288 = scalar_lea.vmem [#allocation4], %s287
        // Predicated region
        $region37: #{tpu_custom_call.1} parent=35 // pred_check
          %p289 = pneg %p67
        $region38: #{tpu_custom_call.1} parent=35 // pred_check_branch
          %291 = sbr.rel (%p289) target = $region40
        $region39: #{tpu_custom_call.1} parent=35 // pred_region
          %292 = dma.done %s285, 128
        $region40: #{tpu_custom_call.1} parent=35 // pred_fallthru
          _
        %s293 = sand.u32 %s32, 1
        %s294 = scalar_lea.sflag [#allocation8], %s293
        %s295 = sand.u32 %s80, 1
        %s296 = smul.addr %s295, 128
        %s297 = scalar_lea.vmem [#allocation7], %s296
        // Predicated region
        $region41: #{tpu_custom_call.1} parent=35 // pred_check
          %p298 = pneg %p93
        $region42: #{tpu_custom_call.1} parent=35 // pred_check_branch
          %300 = sbr.rel (%p298) target = $region44
        $region43: #{tpu_custom_call.1} parent=35 // pred_region
          %301 = dma.done %s294, 2048
        $region44: #{tpu_custom_call.1} parent=35 // pred_fallthru
          _
        %s302 = sand.u32 %s32, 1
        %s303 = scalar_lea.sflag [#allocation8], %s302
        %s304 = sand.u32 %s106, 1
        %s305 = smul.addr %s304, 128
        %s306 = scalar_lea.vmem [#allocation9], %s305
        // Predicated region
        $region45: #{tpu_custom_call.1} parent=35 // pred_check
          %p307 = pneg %p119
        $region46: #{tpu_custom_call.1} parent=35 // pred_check_branch
          %309 = sbr.rel (%p307) target = $region48
        $region47: #{tpu_custom_call.1} parent=35 // pred_region
          %310 = dma.done %s303, 2048
        $region48: #{tpu_custom_call.1} parent=35 // pred_fallthru
          _
        %s311 = sand.u32 %s132, 1
        %s312 = scalar_lea.sflag [#allocation11], %s311
        %s313 = sand.u32 %s132, 1
        %s314 = smul.addr %s313, 128
        %s315 = scalar_lea.vmem [#allocation10], %s314
        // Predicated region
        $region49: #{tpu_custom_call.1} parent=35 // pred_check
          %p316 = pneg %p145
        $region50: #{tpu_custom_call.1} parent=35 // pred_check_branch
          %318 = sbr.rel (%p316) target = $region52
        $region51: #{tpu_custom_call.1} parent=35 // pred_region
          %319 = dma.done %s312, 2048
        $region52: #{tpu_custom_call.1} parent=35 // pred_fallthru
          _
        %s320 = sand.u32 %s54, 1
        %s321 = scalar_lea.sflag [#allocation5], %s320
        %s322 = sand.u32 %s54, 1
        %s323 = smul.addr %s322, 8
        %s324 = scalar_lea.vmem [#allocation4], %s323
        %p325 = pneg %p67
        %p326 = pneg %p64
        %s327 = sand.u32 %s32, 1
        %s328 = scalar_lea.sflag [#allocation8], %s327
        %s329 = sand.u32 %s80, 1
        %s330 = smul.addr %s329, 128
        %s331 = scalar_lea.vmem [#allocation7], %s330
        %p332 = pneg %p93
        %p333 = pneg %p90
        %s334 = sand.u32 %s32, 1
        %s335 = scalar_lea.sflag [#allocation8], %s334
        %s336 = sand.u32 %s106, 1
        %s337 = smul.addr %s336, 128
        %s338 = scalar_lea.vmem [#allocation9], %s337
        %p339 = pneg %p119
        %p340 = pneg %p116
        %s341 = sand.u32 %s132, 1
        %s342 = scalar_lea.sflag [#allocation11], %s341
        %s343 = sand.u32 %s132, 1
        %s344 = smul.addr %s343, 128
        %s345 = scalar_lea.vmem [#allocation10], %s344
        %p346 = pneg %p145
        %p347 = pneg %p142
        %p348 = pneg %p173
        %p349 = pneg %p170
        %s350 = sand.u32 %s160, 1
        %s351 = scalar_lea.sflag [#allocation6], %s350
        %s352 = sand.u32 %s160, 1
        %s353 = smul.addr %s352, 16
        %s354 = scalar_lea.vmem [#allocation12], %s353
        %s355 = sadd.s32 %s36, %s37
        %s356 = smul.u32 2, %s355
        %s357 = sadd.s32 %s36, %s37
        %s358 = smul.u32 2, %s357
        %s360 = sld [smem:[#allocation3 + %s36]]
        %s361 = smul.u32 %s37, 16
        %p362 = scmp.lt.s32.totalorder %s361, %s360
        // Predicated region
        $region53: #{tpu_custom_call.1} parent=35 // pred_check
          %p363 = pneg %p362
        $region54: #{tpu_custom_call.1} parent=35 // pred_check_branch
          %365 = sbr.rel (%p363) target = $region56
        $region55: #{tpu_custom_call.1} parent=35 // pred_region
          %v366 = vld [vmem:[%s288] sm:$0xf]
          %v367 = vld [vmem:[%s288 + $0x4] sm:$0xf]
          %v368 = vld [vmem:[%s297] sm:$0xff]
          %v369 = vld [vmem:[%s297 + $0x8] sm:$0xff]
          %v370 = vld [vmem:[%s297 + $0x10] sm:$0xff]
          %v371 = vld [vmem:[%s297 + $0x18] sm:$0xff]
          %v372 = vld [vmem:[%s297 + $0x20] sm:$0xff]
          %v373 = vld [vmem:[%s297 + $0x28] sm:$0xff]
          %v374 = vld [vmem:[%s297 + $0x30] sm:$0xff]
          %v375 = vld [vmem:[%s297 + $0x38] sm:$0xff]
          %v376 = vld [vmem:[%s297 + $0x40] sm:$0xff]
          %v377 = vld [vmem:[%s297 + $0x48] sm:$0xff]
          %v378 = vld [vmem:[%s297 + $0x50] sm:$0xff]
          %v379 = vld [vmem:[%s297 + $0x58] sm:$0xff]
          %v380 = vld [vmem:[%s297 + $0x60] sm:$0xff]
          %v381 = vld [vmem:[%s297 + $0x68] sm:$0xff]
          %v382 = vld [vmem:[%s297 + $0x70] sm:$0xff]
          %v383 = vld [vmem:[%s297 + $0x78] sm:$0xff]
          %v386 = vunpack.c.l.b16 %v366
          %v387 = vunpack.c.l.b16 %v367
          %v388 = vpack.c.b16 %v387, %v386
          %v406 = vunpack.c.l.b16 %v368
          %v407 = vunpack.c.h.b16 %v368
          %v408 = vunpack.c.l.b16 %v369
          %v409 = vunpack.c.h.b16 %v369
          %v410 = vunpack.c.l.b16 %v370
          %v411 = vunpack.c.h.b16 %v370
          %v412 = vunpack.c.l.b16 %v371
          %v413 = vunpack.c.h.b16 %v371
          %v414 = vunpack.c.l.b16 %v372
          %v415 = vunpack.c.h.b16 %v372
          %v416 = vunpack.c.l.b16 %v373
          %v417 = vunpack.c.h.b16 %v373
          %v418 = vunpack.c.l.b16 %v374
          %v419 = vunpack.c.h.b16 %v374
          %v420 = vunpack.c.l.b16 %v375
          %v421 = vunpack.c.h.b16 %v375
          %v422 = vunpack.c.l.b16 %v376
          %v423 = vunpack.c.h.b16 %v376
          %v424 = vunpack.c.l.b16 %v377
          %v425 = vunpack.c.h.b16 %v377
          %v426 = vunpack.c.l.b16 %v378
          %v427 = vunpack.c.h.b16 %v378
          %v428 = vunpack.c.l.b16 %v379
          %v429 = vunpack.c.h.b16 %v379
          %v430 = vunpack.c.l.b16 %v380
          %v431 = vunpack.c.h.b16 %v380
          %v432 = vunpack.c.l.b16 %v381
          %v433 = vunpack.c.h.b16 %v381
          %v434 = vunpack.c.l.b16 %v382
          %v435 = vunpack.c.h.b16 %v382
          %v436 = vunpack.c.l.b16 %v383
          %v437 = vunpack.c.h.b16 %v383
          %v438 = vpack.c.b16 %v408, %v406
          %v439 = vpack.c.b16 %v409, %v407
          %v440 = vpack.c.b16 %v412, %v410
          %v441 = vpack.c.b16 %v413, %v411
          %v442 = vpack.c.b16 %v416, %v414
          %v443 = vpack.c.b16 %v417, %v415
          %v444 = vpack.c.b16 %v420, %v418
          %v445 = vpack.c.b16 %v421, %v419
          %v446 = vpack.c.b16 %v424, %v422
          %v447 = vpack.c.b16 %v425, %v423
          %v448 = vpack.c.b16 %v428, %v426
          %v449 = vpack.c.b16 %v429, %v427
          %v450 = vpack.c.b16 %v432, %v430
          %v451 = vpack.c.b16 %v433, %v431
          %v452 = vpack.c.b16 %v436, %v434
          %v453 = vpack.c.b16 %v437, %v435
          %470 = vmatprep.subr.bf16.mxu0 %v453
          %471 = vmatpush1.bf16.msra.mxu0 %v452
          %472 = vmatprep.subr.bf16.mxu0 %v451
          %473 = vmatpush1.bf16.msra.mxu0 %v450
          %474 = vmatprep.subr.bf16.mxu0 %v449
          %475 = vmatpush1.bf16.msra.mxu0 %v448
          %476 = vmatprep.subr.bf16.mxu0 %v447
          %477 = vmatpush1.bf16.msra.mxu0 %v446
          %478 = vmatprep.subr.bf16.mxu0 %v445
          %479 = vmatpush1.bf16.msra.mxu0 %v444
          %480 = vmatprep.subr.bf16.mxu0 %v443
          %481 = vmatpush1.bf16.msra.mxu0 %v442
          %482 = vmatprep.subr.bf16.mxu0 %v441
          %483 = vmatpush1.bf16.msra.mxu0 %v440
          %484 = vmatprep.subr.bf16.mxu0 %v439
          %485 = vmatpush1.bf16.msra.mxu0 %v438
          %486 = vmatprep.subr.bf16.mxu0 0
          %487 = vmatpush2.bf16.msra.mxu0 0
          %488 = vmatprep.subr.bf16.mxu0 0
          %489 = vmatpush2.bf16.msra.mxu0 0
          %490 = vmatprep.subr.bf16.mxu0 0
          %491 = vmatpush2.bf16.msra.mxu0 0
          %492 = vmatprep.subr.bf16.mxu0 0
          %493 = vmatpush2.bf16.msra.mxu0 0
          %494 = vmatprep.subr.bf16.mxu0 0
          %495 = vmatpush2.bf16.msra.mxu0 0
          %496 = vmatprep.subr.bf16.mxu0 0
          %497 = vmatpush2.bf16.msra.mxu0 0
          %498 = vmatprep.subr.bf16.mxu0 0
          %499 = vmatpush2.bf16.msra.mxu0 0
          %500 = vmatprep.subr.bf16.mxu0 0
          %501 = vmatpush2.bf16.msra.mxu0 0
          %502 = vmatprep.mubr.bf16.mxu0 0
          %503 = vmatmul.mubr.bf16.gmra.mxu0 %v388
          %v504 = vpop.f32.mrf.mxu0
          %v505 = vadd.f32 0.0, %v504
          %v506 = vpop.f32.mrf.mxu0
          %v507 = vadd.f32 0.0, %v506
          %v508 = vpop.f32.mrf.mxu0
          %v509 = vadd.f32 0.0, %v508
          %v510 = vpop.f32.mrf.mxu0
          %v511 = vadd.f32 0.0, %v510
          %512 = vdwg.mxu0
          %v513 = vld [vmem:[%s306] sm:$0xff]
          %v514 = vld [vmem:[%s306 + $0x8] sm:$0xff]
          %v515 = vld [vmem:[%s306 + $0x10] sm:$0xff]
          %v516 = vld [vmem:[%s306 + $0x18] sm:$0xff]
          %v517 = vld [vmem:[%s306 + $0x20] sm:$0xff]
          %v518 = vld [vmem:[%s306 + $0x28] sm:$0xff]
          %v519 = vld [vmem:[%s306 + $0x30] sm:$0xff]
          %v520 = vld [vmem:[%s306 + $0x38] sm:$0xff]
          %v521 = vld [vmem:[%s306 + $0x40] sm:$0xff]
          %v522 = vld [vmem:[%s306 + $0x48] sm:$0xff]
          %v523 = vld [vmem:[%s306 + $0x50] sm:$0xff]
          %v524 = vld [vmem:[%s306 + $0x58] sm:$0xff]
          %v525 = vld [vmem:[%s306 + $0x60] sm:$0xff]
          %v526 = vld [vmem:[%s306 + $0x68] sm:$0xff]
          %v527 = vld [vmem:[%s306 + $0x70] sm:$0xff]
          %v528 = vld [vmem:[%s306 + $0x78] sm:$0xff]
          %v545 = vunpack.c.l.b16 %v513
          %v546 = vunpack.c.h.b16 %v513
          %v547 = vunpack.c.l.b16 %v514
          %v548 = vunpack.c.h.b16 %v514
          %v549 = vunpack.c.l.b16 %v515
          %v550 = vunpack.c.h.b16 %v515
          %v551 = vunpack.c.l.b16 %v516
          %v552 = vunpack.c.h.b16 %v516
          %v553 = vunpack.c.l.b16 %v517
          %v554 = vunpack.c.h.b16 %v517
          %v555 = vunpack.c.l.b16 %v518
          %v556 = vunpack.c.h.b16 %v518
          %v557 = vunpack.c.l.b16 %v519
          %v558 = vunpack.c.h.b16 %v519
          %v559 = vunpack.c.l.b16 %v520
          %v560 = vunpack.c.h.b16 %v520
          %v561 = vunpack.c.l.b16 %v521
          %v562 = vunpack.c.h.b16 %v521
          %v563 = vunpack.c.l.b16 %v522
          %v564 = vunpack.c.h.b16 %v522
          %v565 = vunpack.c.l.b16 %v523
          %v566 = vunpack.c.h.b16 %v523
          %v567 = vunpack.c.l.b16 %v524
          %v568 = vunpack.c.h.b16 %v524
          %v569 = vunpack.c.l.b16 %v525
          %v570 = vunpack.c.h.b16 %v525
          %v571 = vunpack.c.l.b16 %v526
          %v572 = vunpack.c.h.b16 %v526
          %v573 = vunpack.c.l.b16 %v527
          %v574 = vunpack.c.h.b16 %v527
          %v575 = vunpack.c.l.b16 %v528
          %v576 = vunpack.c.h.b16 %v528
          %v577 = vpack.c.b16 %v547, %v545
          %v578 = vpack.c.b16 %v548, %v546
          %v579 = vpack.c.b16 %v551, %v549
          %v580 = vpack.c.b16 %v552, %v550
          %v581 = vpack.c.b16 %v555, %v553
          %v582 = vpack.c.b16 %v556, %v554
          %v583 = vpack.c.b16 %v559, %v557
          %v584 = vpack.c.b16 %v560, %v558
          %v585 = vpack.c.b16 %v563, %v561
          %v586 = vpack.c.b16 %v564, %v562
          %v587 = vpack.c.b16 %v567, %v565
          %v588 = vpack.c.b16 %v568, %v566
          %v589 = vpack.c.b16 %v571, %v569
          %v590 = vpack.c.b16 %v572, %v570
          %v591 = vpack.c.b16 %v575, %v573
          %v592 = vpack.c.b16 %v576, %v574
          %609 = vmatprep.subr.bf16.mxu0 %v592
          %610 = vmatpush1.bf16.msra.mxu0 %v591
          %611 = vmatprep.subr.bf16.mxu0 %v590
          %612 = vmatpush1.bf16.msra.mxu0 %v589
          %613 = vmatprep.subr.bf16.mxu0 %v588
          %614 = vmatpush1.bf16.msra.mxu0 %v587
          %615 = vmatprep.subr.bf16.mxu0 %v586
          %616 = vmatpush1.bf16.msra.mxu0 %v585
          %617 = vmatprep.subr.bf16.mxu0 %v584
          %618 = vmatpush1.bf16.msra.mxu0 %v583
          %619 = vmatprep.subr.bf16.mxu0 %v582
          %620 = vmatpush1.bf16.msra.mxu0 %v581
          %621 = vmatprep.subr.bf16.mxu0 %v580
          %622 = vmatpush1.bf16.msra.mxu0 %v579
          %623 = vmatprep.subr.bf16.mxu0 %v578
          %624 = vmatpush1.bf16.msra.mxu0 %v577
          %625 = vmatprep.subr.bf16.mxu0 0
          %626 = vmatpush2.bf16.msra.mxu0 0
          %627 = vmatprep.subr.bf16.mxu0 0
          %628 = vmatpush2.bf16.msra.mxu0 0
          %629 = vmatprep.subr.bf16.mxu0 0
          %630 = vmatpush2.bf16.msra.mxu0 0
          %631 = vmatprep.subr.bf16.mxu0 0
          %632 = vmatpush2.bf16.msra.mxu0 0
          %633 = vmatprep.subr.bf16.mxu0 0
          %634 = vmatpush2.bf16.msra.mxu0 0
          %635 = vmatprep.subr.bf16.mxu0 0
          %636 = vmatpush2.bf16.msra.mxu0 0
          %637 = vmatprep.subr.bf16.mxu0 0
          %638 = vmatpush2.bf16.msra.mxu0 0
          %639 = vmatprep.subr.bf16.mxu0 0
          %640 = vmatpush2.bf16.msra.mxu0 0
          %641 = vmatprep.mubr.bf16.mxu0 0
          %642 = vmatmul.mubr.bf16.gmra.mxu0 %v388
          %v643 = vpop.f32.mrf.mxu0
          %v644 = vadd.f32 0.0, %v643
          %v645 = vpop.f32.mrf.mxu0
          %v646 = vadd.f32 0.0, %v645
          %v647 = vpop.f32.mrf.mxu0
          %v648 = vadd.f32 0.0, %v647
          %v649 = vpop.f32.mrf.mxu0
          %v650 = vadd.f32 0.0, %v649
          %651 = vdwg.mxu0
          %v652 = vxor.u32 %v505, 2147483648
          %v653 = vxor.u32 %v507, 2147483648
          %v654 = vxor.u32 %v509, 2147483648
          %v655 = vxor.u32 %v511, 2147483648
          %v656 = vmul.f32 %v652, 1.442695
          %v657 = vpow.pop %v656
          %v658 = vmul.f32 %v653, 1.442695
          %v659 = vpow.pop %v658
          %v660 = vmul.f32 %v654, 1.442695
          %v661 = vpow.pop %v660
          %v662 = vmul.f32 %v655, 1.442695
          %v663 = vpow.pop %v662
          %v664 = vadd.f32 %v657, 1.0
          %v665 = vadd.f32 %v659, 1.0
          %v666 = vadd.f32 %v661, 1.0
          %v667 = vadd.f32 %v663, 1.0
          %v668 = vrcp.pop %v664
          %v669 = vmul.f32 1.0, %v668
          %v670 = vrcp.pop %v665
          %v671 = vmul.f32 1.0, %v670
          %v672 = vrcp.pop %v666
          %v673 = vmul.f32 1.0, %v672
          %v674 = vrcp.pop %v667
          %v675 = vmul.f32 1.0, %v674
          %v676 = vmul.f32 %v505, %v669
          %v677 = vmul.f32 %v507, %v671
          %v678 = vmul.f32 %v509, %v673
          %v679 = vmul.f32 %v511, %v675
          %v680 = vmul.f32 %v676, %v644
          %v681 = vmul.f32 %v677, %v646
          %v682 = vmul.f32 %v678, %v648
          %v683 = vmul.f32 %v679, %v650
          %v684 = vpack.c.bf16 %v682, %v680
          %v685 = vpack.c.bf16 %v683, %v681
          %v686 = vld [vmem:[%s315] sm:$0xf]
          %v687 = vld [vmem:[%s315 + $0x4] sm:$0xf]
          %v688 = vld [vmem:[%s315 + $0x8] sm:$0xf]
          %v689 = vld [vmem:[%s315 + $0xc] sm:$0xf]
          %v690 = vld [vmem:[%s315 + $0x10] sm:$0xf]
          %v691 = vld [vmem:[%s315 + $0x14] sm:$0xf]
          %v692 = vld [vmem:[%s315 + $0x18] sm:$0xf]
          %v693 = vld [vmem:[%s315 + $0x1c] sm:$0xf]
          %v694 = vld [vmem:[%s315 + $0x20] sm:$0xf]
          %v695 = vld [vmem:[%s315 + $0x24] sm:$0xf]
          %v696 = vld [vmem:[%s315 + $0x28] sm:$0xf]
          %v697 = vld [vmem:[%s315 + $0x2c] sm:$0xf]
          %v698 = vld [vmem:[%s315 + $0x30] sm:$0xf]
          %v699 = vld [vmem:[%s315 + $0x34] sm:$0xf]
          %v700 = vld [vmem:[%s315 + $0x38] sm:$0xf]
          %v701 = vld [vmem:[%s315 + $0x3c] sm:$0xf]
          %v702 = vld [vmem:[%s315 + $0x40] sm:$0xf]
          %v703 = vld [vmem:[%s315 + $0x44] sm:$0xf]
          %v704 = vld [vmem:[%s315 + $0x48] sm:$0xf]
          %v705 = vld [vmem:[%s315 + $0x4c] sm:$0xf]
          %v706 = vld [vmem:[%s315 + $0x50] sm:$0xf]
          %v707 = vld [vmem:[%s315 + $0x54] sm:$0xf]
          %v708 = vld [vmem:[%s315 + $0x58] sm:$0xf]
          %v709 = vld [vmem:[%s315 + $0x5c] sm:$0xf]
          %v710 = vld [vmem:[%s315 + $0x60] sm:$0xf]
          %v711 = vld [vmem:[%s315 + $0x64] sm:$0xf]
          %v712 = vld [vmem:[%s315 + $0x68] sm:$0xf]
          %v713 = vld [vmem:[%s315 + $0x6c] sm:$0xf]
          %v714 = vld [vmem:[%s315 + $0x70] sm:$0xf]
          %v715 = vld [vmem:[%s315 + $0x74] sm:$0xf]
          %v716 = vld [vmem:[%s315 + $0x78] sm:$0xf]
          %v717 = vld [vmem:[%s315 + $0x7c] sm:$0xf]
          %v750 = vunpack.c.l.b16 %v686
          %v751 = vunpack.c.l.b16 %v687
          %v752 = vunpack.c.l.b16 %v688
          %v753 = vunpack.c.l.b16 %v689
          %v754 = vunpack.c.l.b16 %v690
          %v755 = vunpack.c.l.b16 %v691
          %v756 = vunpack.c.l.b16 %v692
          %v757 = vunpack.c.l.b16 %v693
          %v758 = vunpack.c.l.b16 %v694
          %v759 = vunpack.c.l.b16 %v695
          %v760 = vunpack.c.l.b16 %v696
          %v761 = vunpack.c.l.b16 %v697
          %v762 = vunpack.c.l.b16 %v698
          %v763 = vunpack.c.l.b16 %v699
          %v764 = vunpack.c.l.b16 %v700
          %v765 = vunpack.c.l.b16 %v701
          %v766 = vunpack.c.l.b16 %v702
          %v767 = vunpack.c.l.b16 %v703
          %v768 = vunpack.c.l.b16 %v704
          %v769 = vunpack.c.l.b16 %v705
          %v770 = vunpack.c.l.b16 %v706
          %v771 = vunpack.c.l.b16 %v707
          %v772 = vunpack.c.l.b16 %v708
          %v773 = vunpack.c.l.b16 %v709
          %v774 = vunpack.c.l.b16 %v710
          %v775 = vunpack.c.l.b16 %v711
          %v776 = vunpack.c.l.b16 %v712
          %v777 = vunpack.c.l.b16 %v713
          %v778 = vunpack.c.l.b16 %v714
          %v779 = vunpack.c.l.b16 %v715
          %v780 = vunpack.c.l.b16 %v716
          %v781 = vunpack.c.l.b16 %v717
          %v782 = vpack.c.b16 %v751, %v750
          %v783 = vpack.c.b16 %v753, %v752
          %v784 = vpack.c.b16 %v755, %v754
          %v785 = vpack.c.b16 %v757, %v756
          %v786 = vpack.c.b16 %v759, %v758
          %v787 = vpack.c.b16 %v761, %v760
          %v788 = vpack.c.b16 %v763, %v762
          %v789 = vpack.c.b16 %v765, %v764
          %v790 = vpack.c.b16 %v767, %v766
          %v791 = vpack.c.b16 %v769, %v768
          %v792 = vpack.c.b16 %v771, %v770
          %v793 = vpack.c.b16 %v773, %v772
          %v794 = vpack.c.b16 %v775, %v774
          %v795 = vpack.c.b16 %v777, %v776
          %v796 = vpack.c.b16 %v779, %v778
          %v797 = vpack.c.b16 %v781, %v780
          %814 = vmatprep.subr.bf16.mxu0 0
          %815 = vmatpush1.bf16.msra.mxu0 %v789
          %816 = vmatprep.subr.bf16.mxu0 0
          %817 = vmatpush1.bf16.msra.mxu0 %v788
          %818 = vmatprep.subr.bf16.mxu0 0
          %819 = vmatpush1.bf16.msra.mxu0 %v787
          %820 = vmatprep.subr.bf16.mxu0 0
          %821 = vmatpush1.bf16.msra.mxu0 %v786
          %822 = vmatprep.subr.bf16.mxu0 0
          %823 = vmatpush1.bf16.msra.mxu0 %v785
          %824 = vmatprep.subr.bf16.mxu0 0
          %825 = vmatpush1.bf16.msra.mxu0 %v784
          %826 = vmatprep.subr.bf16.mxu0 0
          %827 = vmatpush1.bf16.msra.mxu0 %v783
          %828 = vmatprep.subr.bf16.mxu0 0
          %829 = vmatpush1.bf16.msra.mxu0 %v782
          %830 = vmatprep.subr.bf16.mxu0 0
          %831 = vmatpush2.bf16.msra.mxu0 %v797
          %832 = vmatprep.subr.bf16.mxu0 0
          %833 = vmatpush2.bf16.msra.mxu0 %v796
          %834 = vmatprep.subr.bf16.mxu0 0
          %835 = vmatpush2.bf16.msra.mxu0 %v795
          %836 = vmatprep.subr.bf16.mxu0 0
          %837 = vmatpush2.bf16.msra.mxu0 %v794
          %838 = vmatprep.subr.bf16.mxu0 0
          %839 = vmatpush2.bf16.msra.mxu0 %v793
          %840 = vmatprep.subr.bf16.mxu0 0
          %841 = vmatpush2.bf16.msra.mxu0 %v792
          %842 = vmatprep.subr.bf16.mxu0 0
          %843 = vmatpush2.bf16.msra.mxu0 %v791
          %844 = vmatprep.subr.bf16.mxu0 0
          %845 = vmatpush2.bf16.msra.mxu0 %v790
          %846 = vmatprep.mubr.bf16.mxu0 %v685
          %847 = vmatmul.mubr.bf16.gmra.mxu0 %v684
          %v848 = vpop.f32.mrf.mxu0
          %v849 = vadd.f32 0.0, %v848
          %v850 = vpop.f32.mrf.mxu0
          %v851 = vpop.f32.mrf.mxu0
          %v852 = vadd.f32 0.0, %v851
          %v853 = vpop.f32.mrf.mxu0
          %854 = vdwg.mxu0
          %855 = vst [vmem:[%s354] sm:$0xff] %v849
          %856 = vst [vmem:[%s354 + $0x8] sm:$0xff] %v852
        $region56: #{tpu_custom_call.1} parent=35 // pred_fallthru
          _
        %p857 = scmp.ge.s32.totalorder %s361, %s360
        // Predicated region
        $region57: #{tpu_custom_call.1} parent=35 // pred_check
          %p858 = pneg %p857
        $region58: #{tpu_custom_call.1} parent=35 // pred_check_branch
          %860 = sbr.rel (%p858) target = $region60
        $region59: #{tpu_custom_call.1} parent=35 // pred_region
          %861 = vst [vmem:[%s354] sm:$0xff] 0.0
          %862 = vst [vmem:[%s354 + $0x8] sm:$0xff] 0.0
        $region60: #{tpu_custom_call.1} parent=35 // pred_fallthru
          _
        %s863 = sand.u32 %s160, 1
        %s864 = scalar_lea.sflag [#allocation6], %s863
        %s865 = sand.u32 %s160, 1
        %s866 = smul.addr %s865, 16
        %s867 = scalar_lea.vmem [#allocation12], %s866
        // Predicated region
        $region61: #{tpu_custom_call.1} parent=35 // pred_check
          %p868 = pneg %p170
        $region62: #{tpu_custom_call.1} parent=35 // pred_check_branch
          %870 = sbr.rel (%p868) target = $region64
        $region63: #{tpu_custom_call.1} parent=35 // pred_region
          %s871 = sadd.s32 %s36, %s37
          %s872 = smul.u32 2, %s871
          %s874 = ssub.s32 256, 256
          %875 = vsyncadd %s864, %s874
          %s876 = smul.addr %s872, 128
          %s877 = scalar_lea.hbm %s5, %s876
          %s878 = sshll.u32 %s867, 4
          %s879 = int_to_ptr.vmem [resolvable:$true] %s878
          %884 = dma.vmem_to_hbm [thread:$0]  %s879, 256, %s877, %s864, 128, 128, 8
        $region64: #{tpu_custom_call.1} parent=35 // pred_fallthru
          _
      $region36: #{tpu_custom_call.1} parent=5 // pred_fallthru
        _
      %p885 = scmp.le.s32.totalorder 2, %s27
      // Predicated region
      $region65: #{tpu_custom_call.1} parent=5 // pred_check
        %p886 = pneg %p885
      $region66: #{tpu_custom_call.1} parent=5 // pred_check_branch
        %888 = sbr.rel (%p886) target = $region68
      $region67: #{tpu_custom_call.1} parent=5 // pred_region
        %s889 = ssub.s32 %s27, 2
        // Predicated region
        $region69: #{tpu_custom_call.1} parent=67 // pred_check
          %p890 = pneg %p176
        $region70: #{tpu_custom_call.1} parent=67 // pred_check_branch
          %892 = sbr.rel (%p890) target = $region72
        $region71: #{tpu_custom_call.1} parent=67 // pred_region
          %s893 = sand.u32 %s161, 1
          %s894 = scalar_lea.sflag [#allocation6], %s893
          %s895 = sand.u32 %s161, 1
          %s896 = smul.addr %s895, 16
          %s897 = scalar_lea.vmem [#allocation12], %s896
          %898 = dma.done %s894, 256
        $region72: #{tpu_custom_call.1} parent=67 // pred_fallthru
          _
      $region68: #{tpu_custom_call.1} parent=5 // pred_fallthru
        _
    $region6: #{tpu_custom_call.1} parent=1 // loop_footer
      %s31 = sadd.s32 1, %s27
    $region7: #{tpu_custom_call.1} parent=1 // loop_footer_branch
      %26 = sbr.rel target = $region3
    $region8: #{tpu_custom_call.1} parent=1 // loop_exit
      _
    %899 = vsyncpa [#allocation5], 1
    %s900 = scalar_lea.sflag [#allocation5], 1
    %901 = vsyncpa %s900, 1
    %902 = vsyncpa [#allocation8], 1
    %s903 = scalar_lea.sflag [#allocation8], 1
    %904 = vsyncpa %s903, 1
    %905 = vsyncpa [#allocation11], 1
    %s906 = scalar_lea.sflag [#allocation11], 1
    %907 = vsyncpa %s906, 1
    %908 = vsyncpa [#allocation6], 1
    %s909 = scalar_lea.sflag [#allocation6], 1
    %910 = vsyncpa %s909, 1

</llo_original>
